<compile_context>
chip_gen: v7x
topology: tpu7x:2x2x1
jax: 0.10.0
libtpu: 0.0.40
codegen_flags: <defaults>
</compile_context>

<pallas_src>
import functools

import jax
import jax.numpy as jnp
from jax.experimental import pallas as pl
from jax.experimental.pallas import tpu as pltpu


def _focal_kernel(x_ref, t_ref, out_ref, *, gamma, D, TD, nd):
    """One (n, s, d) grid step.

    x_ref:   (1, C, TD) logits tile (classes on sublanes, positions on lanes).
    t_ref:   (1, 1, TD) integer target class per position.
    out_ref: (1, 1, C, 1) per-(image, split) per-class sums; resident across d
             and used directly as the accumulator.
    """
    s = pl.program_id(1)
    d = pl.program_id(2)
    base = (s * nd + d) * TD            # logical lane offset of this tile

    x = x_ref[0].astype(jnp.float32)    # (C, TD)
    t = t_ref[0].astype(jnp.int32)      # (1, TD)
    C = x.shape[0]

    # Ragged-tail / duplicated-tail-block mask: lanes at or beyond D are junk.
    lane = jax.lax.broadcasted_iota(jnp.int32, (1, TD), 1) + base
    valid = lane < D                                            # (1, TD)
    class_iota = jax.lax.broadcasted_iota(jnp.int32, (C, TD), 0)
    sel = (class_iota == t) & valid                             # (C, TD)

    if C > 1:
        # Numerically stable log-softmax over the class (sublane) axis.
        # Single masked reduce for the target-class logit; pt_t via exp
        # (EUP slot) instead of a second reduce + full-width divide.
        m = jnp.max(x, axis=0, keepdims=True)                   # (1, TD)
        shifted = x - m                                         # (C, TD)
        denom = jnp.sum(jnp.exp(shifted), axis=0, keepdims=True)
        logpt_t = (jnp.sum(jnp.where(sel, shifted, 0.0), axis=0, keepdims=True)
                   - jnp.log(denom))                            # (1, TD)
        pt_t = jnp.exp(logpt_t)                                 # (1, TD)
    else:
        pt_t = jax.nn.sigmoid(x)                                # (1, TD)
        logpt_t = jnp.log(pt_t)

    # gamma is a Python int here -> lax.integer_pow (VPU multiplies, not EUP).
    focal_t = -((1.0 - pt_t) ** gamma) * logpt_t                # (1, TD)

    # Select (NOT multiply) so NaN/Inf from out-of-bounds garbage lanes never
    # reaches the sum; scatter to the target class row and reduce over lanes.
    contrib = jnp.sum(jnp.where(sel, focal_t, 0.0), axis=1, keepdims=True)  # (C, 1)

    @pl.when(d == 0)
    def _():
        out_ref[0, 0] = contrib          # assign: no zero-init pass needed

    @pl.when(d > 0)
    def _():
        out_ref[0, 0] += contrib


def _vmem_capacity_bytes():
    try:
        return int(pltpu.get_tpu_info().vmem_capacity_bytes)
    except Exception:
        return 64 * 1024 * 1024          # conservative: v7x per-TC VMEM


def _pick_lane_tile(C, D, x_dtype, t_dtype, vmem_cap):
    """Lane tile TD (multiple of 128) sized from a VMEM working-set budget."""
    budget = vmem_cap // 5               # leave headroom for compiler temps
    x_bytes = jnp.dtype(x_dtype).itemsize
    t_bytes = jnp.dtype(t_dtype).itemsize
    # Per-lane VMEM: 2x double-buffered logits + 2x targets + ~8 f32 temps/row.
    per_lane = 2 * C * x_bytes + 2 * t_bytes + 8 * C * 4
    td = (budget // per_lane // 128) * 128
    td = min(td, 128 * 1024)                       # sanity cap
    td = min(td, ((D + 127) // 128) * 128)         # no point tiling past D
    return max(128, td)


def focal_loss_pallas(x, target, gamma=2, weight_c=None, weight_v=None,
                      *, lane_tile=None, spatial_splits=None):
    """x: (N, C, d1, ..., dn) float; target: (N, d1, ..., dn) int in [0, C)."""
    del weight_c   # dead in the reference (overwritten by normalized weight_v)
    N = x.shape[0]
    C = x.shape[1]

    # Native NCHW order: no transpose, no one-hot, no padded HBM copies.
    logits = x.reshape(N, C, -1)                    # (N, C, D)
    D = logits.shape[-1]

    tdtype = jnp.int8 if C <= 128 else jnp.int32    # shrink target HBM traffic
    tgt = target.reshape(N, 1, -1).astype(tdtype)   # (N, 1, D)

    vmem_cap = _vmem_capacity_bytes()
    if lane_tile is None:
        TD = _pick_lane_tile(C, D, logits.dtype, tdtype, vmem_cap)
    else:
        TD = max(128, (int(lane_tile) // 128) * 128)

    nb = pl.cdiv(D, TD)                             # lane tiles along D

    # Spatial split so v7x's 2 TensorCores both get work when N < 2.
    if spatial_splits is None:
        S = 2 if (N < 2 and nb >= 2) else 1
    else:
        S = max(1, min(int(spatial_splits), nb))
    nd = pl.cdiv(nb, S)                             # d-steps per split

    g = gamma
    if isinstance(g, float) and float(g).is_integer():
        g = int(g)

    def _in_map(n, s, d):
        # Clamp duplicated tail blocks into range; they are fully masked
        # in-kernel (logical lane index >= D), so they contribute 0.
        return (n, 0, jnp.minimum(s * nd + d, nb - 1))

    partial = pl.pallas_call(
        functools.partial(_focal_kernel, gamma=g, D=D, TD=TD, nd=nd),
        out_shape=jax.ShapeDtypeStruct((N, S, C, 1), jnp.float32),
        grid_spec=pltpu.PrefetchScalarGridSpec(
            num_scalar_prefetch=0,
            grid=(N, S, nd),
            in_specs=[
                pl.BlockSpec((1, C, TD), _in_map),
                pl.BlockSpec((1, 1, TD), _in_map),
            ],
            out_specs=pl.BlockSpec((1, 1, C, 1), lambda n, s, d: (n, s, 0, 0)),
        ),
        compiler_params=pltpu.CompilerParams(
            # N and the spatial-split axis are independent; D accumulates.
            dimension_semantics=("parallel", "parallel", "arbitrary"),
            vmem_limit_bytes=vmem_cap // 2,
        ),
    )(logits, tgt)

    col_sum = jnp.sum(partial, axis=(0, 1, 3))      # (C,)
    M = N * D

    # Reference computes mask / weight_c but then overwrites weight with the
    # L1-normalized weight_v — reproduce exactly.
    wv = (jnp.ones((C,), jnp.float32) if weight_v is None
          else jnp.asarray(weight_v, jnp.float32))
    weight = wv / jnp.maximum(jnp.sum(jnp.abs(wv)), 1e-12)   # F.normalize(p=1)

    focals = C * (col_sum / M)                      # C * mean(dim=0)
    return jnp.sum(weight * focals)
    # TODO(synk): forward-only — no custom VJP, so jax.grad through the
    # pallas_call is not supported.


def _focal_loss_ref(x, target, gamma=2, weight_v=None):
    """Pure-JAX reference mirroring the PyTorch code (for verification)."""
    N, C = x.shape[0], x.shape[1]
    logits = jnp.transpose(x.reshape(N, C, -1), (0, 2, 1)).reshape(-1, C)
    onehot = jax.nn.one_hot(target.reshape(-1), C, dtype=jnp.float32)
    wv = (jnp.ones((C,), jnp.float32) if weight_v is None
          else jnp.asarray(weight_v, jnp.float32))
    weight = wv / jnp.maximum(jnp.sum(jnp.abs(wv)), 1e-12)
    if C > 1:
        logpt = jax.nn.log_softmax(logits, axis=-1)
        pt = jnp.exp(logpt)
    else:
        pt = jax.nn.sigmoid(logits)
        logpt = jnp.log(pt)
    focals = -((1.0 - pt) ** gamma) * onehot * logpt
    focals = C * jnp.mean(focals, axis=0)
    return jnp.sum(weight * focals)


if __name__ == "__main__":
    key = jax.random.PRNGKey(0)
    kx, kt = jax.random.split(key)

    # Small canonical shape from the module spec.
    N, C, H, W = 2, 4, 16, 16
    x = jax.random.uniform(kx, (N, C, H, W), dtype=jnp.float32)  # 0 <= v <= 1
    target = jax.random.randint(kt, (N, H, W), 0, C, dtype=jnp.int32)

    loss = jax.block_until_ready(focal_loss_pallas(x, target, gamma=2))
    ref = _focal_loss_ref(x, target, gamma=2)
    assert jnp.allclose(loss, ref, rtol=1e-5, atol=1e-5), (loss, ref)

    # Second check: exercises the ragged-tail lane mask (D not a multiple of
    # TD), the two-way spatial split (v7x N<2 path) incl. clamped duplicate
    # tail blocks, int8 targets, and a non-trivial weight_v.
    k2x, k2t = jax.random.split(jax.random.PRNGKey(1))
    N2, C2, D2 = 1, 3, 5000
    x2 = jax.random.uniform(k2x, (N2, C2, D2), dtype=jnp.float32)
    t2 = jax.random.randint(k2t, (N2, D2), 0, C2, dtype=jnp.int32)
    wv = [0.2, 0.5, 0.3]
    loss2 = jax.block_until_ready(
        focal_loss_pallas(x2, t2, gamma=2, weight_v=wv,
                          lane_tile=1024, spatial_splits=2))
    ref2 = _focal_loss_ref(x2, t2, gamma=2, weight_v=wv)
    assert jnp.allclose(loss2, ref2, rtol=1e-5, atol=1e-5), (loss2, ref2)

    print("KERNEL_OK")
</pallas_src>

<mosaic_0001>
module attributes {stable_mosaic.version = 11 : i64} {
  func.func @_focal_kernel(%arg0: i32, %arg1: i32, %arg2: i32, %arg3: memref<1x4x256xf32, #tpu.memory_space<vmem>>, %arg4: memref<1x1x256xi8, #tpu.memory_space<vmem>>, %arg5: memref<1x1x4x1xf32, #tpu.memory_space<vmem>>) attributes {dimension_semantics = [#tpu.dimension_semantics<parallel>, #tpu.dimension_semantics<parallel>, #tpu.dimension_semantics<arbitrary>], iteration_bounds = array<i64: 2, 1, 1>, scalar_prefetch = 0 : i64, scratch_operands = 0 : i64, tpu.core_type = #tpu.core_type<tc>, window_params = [{transform_indices = @transform_0, window_bounds = array<i64: 1, 4, 256>}, {transform_indices = @transform_1, window_bounds = array<i64: 1, 1, 256>}, {transform_indices = @transform_2, window_bounds = array<i64: 1, 1, 4, 1>}]} {
    %c1_i32 = arith.constant 1 : i32
    %0 = arith.muli %arg1, %c1_i32 : i32
    %1 = arith.addi %0, %arg2 : i32
    %c256_i32 = arith.constant 256 : i32
    %2 = arith.muli %1, %c256_i32 : i32
    %c0 = arith.constant 0 : index
    %c0_0 = arith.constant 0 : index
    %c0_1 = arith.constant 0 : index
    %3 = vector.load %arg3[%c0, %c0_0, %c0_1] : memref<1x4x256xf32, #tpu.memory_space<vmem>>, vector<1x4x256xf32>
    %4 = vector.shape_cast %3 : vector<1x4x256xf32> to vector<4x256xf32>
    %c0_2 = arith.constant 0 : index
    %c0_3 = arith.constant 0 : index
    %c0_4 = arith.constant 0 : index
    %5 = vector.load %arg4[%c0_2, %c0_3, %c0_4] : memref<1x1x256xi8, #tpu.memory_space<vmem>>, vector<1x1x256xi8>
    %6 = vector.shape_cast %5 : vector<1x1x256xi8> to vector<1x256xi8>
    %7 = arith.extsi %6 : vector<1x256xi8> to vector<1x256xi32>
    %8 = tpu.iota {dimensions = array<i32: 1>} : vector<1x256xi32>
    %9 = vector.broadcast %2 : i32 to vector<1x256xi32>
    %10 = arith.addi %8, %9 : vector<1x256xi32>
    %c256_i32_5 = arith.constant 256 : i32
    %11 = vector.broadcast %c256_i32_5 : i32 to vector<1x256xi32>
    %12 = arith.cmpi slt, %10, %11 : vector<1x256xi32>
    %13 = tpu.iota {dimensions = array<i32: 0>} : vector<4x256xi32>
    %14 = vector.broadcast %7 : vector<1x256xi32> to vector<4x256xi32>
    %15 = arith.cmpi eq, %13, %14 : vector<4x256xi32>
    %16 = vector.broadcast %12 : vector<1x256xi1> to vector<4x256xi1>
    %17 = arith.andi %15, %16 : vector<4x256xi1>
    %cst = arith.constant dense<0xFF800000> : vector<256xf32>
    %18 = vector.multi_reduction <maximumf>, %4, %cst [0] : vector<4x256xf32> to vector<256xf32>
    %19 = vector.shape_cast %18 : vector<256xf32> to vector<1x256xf32>
    %20 = vector.broadcast %19 : vector<1x256xf32> to vector<4x256xf32>
    %21 = arith.subf %4, %20 : vector<4x256xf32>
    %22 = math.exp %21 : vector<4x256xf32>
    %cst_6 = arith.constant dense<0.000000e+00> : vector<256xf32>
    %23 = vector.multi_reduction <add>, %22, %cst_6 [0] : vector<4x256xf32> to vector<256xf32>
    %24 = vector.shape_cast %23 : vector<256xf32> to vector<1x256xf32>
    %cst_7 = arith.constant 0.000000e+00 : f32
    %25 = vector.broadcast %cst_7 : f32 to vector<4x256xf32>
    %26 = arith.select %17, %21, %25 : vector<4x256xi1>, vector<4x256xf32>
    %cst_8 = arith.constant dense<0.000000e+00> : vector<256xf32>
    %27 = vector.multi_reduction <add>, %26, %cst_8 [0] : vector<4x256xf32> to vector<256xf32>
    %28 = vector.shape_cast %27 : vector<256xf32> to vector<1x256xf32>
    %29 = math.log %24 : vector<1x256xf32>
    %30 = arith.subf %28, %29 : vector<1x256xf32>
    %31 = math.exp %30 : vector<1x256xf32>
    %cst_9 = arith.constant 1.000000e+00 : f32
    %32 = vector.broadcast %cst_9 : f32 to vector<1x256xf32>
    %33 = arith.subf %32, %31 : vector<1x256xf32>
    %34 = arith.mulf %33, %33 : vector<1x256xf32>
    %cst_10 = arith.constant 0.000000e+00 : f32
    %35 = vector.broadcast %cst_10 : f32 to vector<1x256xf32>
    %36 = arith.subf %35, %34 : vector<1x256xf32>
    %37 = arith.mulf %36, %30 : vector<1x256xf32>
    %cst_11 = arith.constant 0.000000e+00 : f32
    %38 = vector.shape_cast %37 : vector<1x256xf32> to vector<1x256xf32>
    %39 = vector.broadcast %38 : vector<1x256xf32> to vector<4x256xf32>
    %40 = vector.broadcast %cst_11 : f32 to vector<4x256xf32>
    %41 = arith.select %17, %39, %40 : vector<4x256xi1>, vector<4x256xf32>
    %cst_12 = arith.constant dense<0.000000e+00> : vector<4xf32>
    %42 = vector.multi_reduction <add>, %41, %cst_12 [1] : vector<4x256xf32> to vector<4xf32>
    %43 = vector.shape_cast %42 : vector<4xf32> to vector<4x1xf32>
    %c0_i32 = arith.constant 0 : i32
    %44 = arith.cmpi eq, %arg2, %c0_i32 : i32
    %45 = arith.extui %44 : i1 to i32
    %c0_i32_13 = arith.constant 0 : i32
    %46 = arith.cmpi ne, %45, %c0_i32_13 : i32
    scf.if %46 {
      %c0_16 = arith.constant 0 : index
      %c0_17 = arith.constant 0 : index
      %c0_18 = arith.constant 0 : index
      %c0_19 = arith.constant 0 : index
      %50 = vector.load %arg5[%c0_16, %c0_17, %c0_18, %c0_19] : memref<1x1x4x1xf32, #tpu.memory_space<vmem>>, vector<1x1x4x1xf32>
      %51 = vector.shape_cast %50 : vector<1x1x4x1xf32> to vector<4x1xf32>
      %52 = vector.shape_cast %43 : vector<4x1xf32> to vector<1x1x4x1xf32>
      tpu.vector_store %arg5[%c0_16, %c0_17, %c0_18, %c0_19], %52 {strides = array<i32>} : memref<1x1x4x1xf32, #tpu.memory_space<vmem>>, vector<1x1x4x1xf32>,
    } else {
    }
    %c0_i32_14 = arith.constant 0 : i32
    %47 = arith.cmpi sgt, %arg2, %c0_i32_14 : i32
    %48 = arith.extui %47 : i1 to i32
    %c0_i32_15 = arith.constant 0 : i32
    %49 = arith.cmpi ne, %48, %c0_i32_15 : i32
    scf.if %49 {
      %c0_16 = arith.constant 0 : index
      %c0_17 = arith.constant 0 : index
      %c0_18 = arith.constant 0 : index
      %c0_19 = arith.constant 0 : index
      %50 = vector.load %arg5[%c0_16, %c0_17, %c0_18, %c0_19] : memref<1x1x4x1xf32, #tpu.memory_space<vmem>>, vector<1x1x4x1xf32>
      %51 = vector.shape_cast %50 : vector<1x1x4x1xf32> to vector<4x1xf32>
      %52 = arith.addf %51, %43 : vector<4x1xf32>
      %c0_20 = arith.constant 0 : index
      %c0_21 = arith.constant 0 : index
      %c0_22 = arith.constant 0 : index
      %c0_23 = arith.constant 0 : index
      %53 = vector.load %arg5[%c0_20, %c0_21, %c0_22, %c0_23] : memref<1x1x4x1xf32, #tpu.memory_space<vmem>>, vector<1x1x4x1xf32>
      %54 = vector.shape_cast %53 : vector<1x1x4x1xf32> to vector<4x1xf32>
      %55 = vector.shape_cast %52 : vector<4x1xf32> to vector<1x1x4x1xf32>
      tpu.vector_store %arg5[%c0_20, %c0_21, %c0_22, %c0_23], %55 {strides = array<i32>} : memref<1x1x4x1xf32, #tpu.memory_space<vmem>>, vector<1x1x4x1xf32>,
    } else {
    }
    return
  }
  func.func @transform_0(%arg0: i32, %arg1: i32, %arg2: i32) -> (i32, i32, i32) {
    %c1_i32 = arith.constant 1 : i32
    %0 = arith.muli %arg1, %c1_i32 : i32
    %1 = arith.addi %0, %arg2 : i32
    %c0_i32 = arith.constant 0 : i32
    %2 = arith.minsi %1, %c0_i32 : i32
    %c0_i32_0 = arith.constant 0 : i32
    %c0_i32_1 = arith.constant 0 : i32
    return %arg0, %c0_i32_0, %2 : i32, i32, i32
  }
  func.func @transform_1(%arg0: i32, %arg1: i32, %arg2: i32) -> (i32, i32, i32) {
    %c1_i32 = arith.constant 1 : i32
    %0 = arith.muli %arg1, %c1_i32 : i32
    %1 = arith.addi %0, %arg2 : i32
    %c0_i32 = arith.constant 0 : i32
    %2 = arith.minsi %1, %c0_i32 : i32
    %c0_i32_0 = arith.constant 0 : i32
    %c0_i32_1 = arith.constant 0 : i32
    return %arg0, %c0_i32_0, %2 : i32, i32, i32
  }
  func.func @transform_2(%arg0: i32, %arg1: i32, %arg2: i32) -> (i32, i32, i32, i32) {
    %c0_i32 = arith.constant 0 : i32
    %c0_i32_0 = arith.constant 0 : i32
    %c0_i32_1 = arith.constant 0 : i32
    return %arg0, %arg1, %c0_i32, %c0_i32_0 : i32, i32, i32, i32
  }
}

</mosaic_0001>

<llo_original>
// kernel: tpu_custom_call.1
$region0: #{tpu_custom_call.1}
  #allocation0 [shape = 'u32[]', space=smem, size = 0x4, offset = 0x4, fixed_abs, tag = 'smem constant byte address 0x4 - core index']
  #allocation1 [shape = 'u32[144,128]{1,0:T(1,128)}', space=vmem, size = 0x12000, scoped, tag = 'internal scratch']
  %s0 = inlined_call_operand.hbm [shape: f32[2,4,256], index: 0, kind: input, shape index: {}]
  %s1 = inlined_call_operand.vmem [shape: s8[2,1,256], index: 1, kind: input, shape index: {}]
  %s2 = inlined_call_operand.vmem [shape: f32[2,1,4,1], index: 2, kind: output, shape index: {}]
  %s3 = sld [smem:[#allocation0]]
  $region53: #{tpu_custom_call.1} parent=0
    _
  %s5 = ssub.s32 1, %s3
  %s6 = scalar_select 0, %s5, %s3
  $region1: #{tpu_custom_call.1} parent=0
    #allocation2 [shape = 'u8[8192]{0}', space=vmem, size = 0x2000, scoped, tag = 'input window, operand 0']
    #allocation3 [shape = 's32[2]{0}', space=sflag, size = 0x8, scoped, tag = 'scoped memory for tpu_custom_call.1']
    %7 = vsyncpa [#allocation3], 0
    %s8 = scalar_lea.sflag [#allocation3], 1
    %9 = vsyncpa %s8, 0
    loop: start=0, step=1, limit=4
    $region2: #{tpu_custom_call.1} parent=1 // loop_pre_header
      _
    $region3: #{tpu_custom_call.1} parent=1 // loop_header
      %s11 = sphi 0, %s15
      %p12 = scmp.ge.s32.totalorder %s11, 4
      %s18 = sphi 0, %s37
      %s19 = sphi 0, %s33
      %s20 = sphi 0, %s29
      %s21 = sphi 0, %s18
      %s22 = sphi 0, %s19
      %s23 = sphi 0, %s20
      %s24 = sphi 0, %s21
      %s25 = sphi 0, %s22
      %s26 = sphi 0, %s23
      %s48 = sphi 0, %s50
      %s51 = sphi 0, %s48
      %s52 = sphi 0, %s51
      %s68 = sphi 0, %s52
      %s82 = sphi 0, %s84
      %s85 = sphi 0, %s82
      %s86 = sphi 0, %s85
      %s102 = sphi 0, %s86
      %s110 = sphi 0, %s112
      %s113 = sphi 0, %s110
      %s114 = sphi 0, %s113
      %s130 = sphi 0, %s114
    $region4: #{tpu_custom_call.1} parent=1 // loop_header_branch
      %14 = sbr.rel (%p12) target = $region8
    $region5: #{tpu_custom_call.1} parent=1 // loop_body
      %s16 = ssub.s32 %s11, 1
      %s17 = ssub.s32 %s11, 2
      %s27 = sadd.s32 1, %s20
      %p28 = scmp.ge.s32.totalorder %s27, 1
      %s29 = scalar_select %p28, 0, %s27
      %s30 = sadd.s32 1, %s19
      %s31 = scalar_select %p28, %s30, %s19
      %p32 = scmp.ge.s32.totalorder %s31, 1
      %s33 = scalar_select %p32, 0, %s31
      %s34 = sadd.s32 1, %s18
      %s35 = scalar_select %p32, %s34, %s18
      %p36 = scmp.ge.s32.totalorder %s35, 2
      %s37 = scalar_select %p36, 0, %s35
      %s38 = sadd.s32 %s19, %s20
      %p39 = scmp.lt.s32.totalorder %s38, 0
      %s40 = scalar_select %p39, %s38, 0
      %s41 = sadd.s32 %s33, %s29
      %p42 = scmp.lt.s32.totalorder %s41, 0
      %s43 = scalar_select %p42, %s41, 0
      %s44 = ssub.s32 %s18, %s37
      %s45 = ssub.s32 %s40, %s43
      %s46 = sor.u32 %s44, %s45
      %p47 = scmp.eq.s32.totalorder %s46, 0
      %s49 = sadd.s32 %s48, 1
      %s50 = scalar_select %p47, %s48, %s49
      %p53 = pneg %p47
      %p54 = scmp.eq.s32.totalorder %s11, 1
      %p55 = por %p53, %p54
      %p56 = scmp.ne.s32.totalorder %s48, %s51
      %p57 = scmp.eq.s32.totalorder %s11, 0
      %p58 = por %p56, %p57
      %p59 = scmp.ne.s32.totalorder %s48, %s51
      %p60 = scmp.eq.s32.totalorder %s16, 1
      %p61 = por %p59, %p60
      %p62 = scmp.ne.s32.totalorder %s51, %s52
      %p63 = scmp.eq.s32.totalorder %s16, 0
      %p64 = por %p62, %p63
      %p65 = scmp.ne.s32.totalorder %s51, %s52
      %p66 = scmp.eq.s32.totalorder %s17, 1
      %p67 = por %p65, %p66
      %p69 = scmp.ne.s32.totalorder %s52, %s68
      %p70 = scmp.eq.s32.totalorder %s17, 0
      %p71 = por %p69, %p70
      %s72 = sadd.s32 %s19, %s20
      %p73 = scmp.lt.s32.totalorder %s72, 0
      %s74 = scalar_select %p73, %s72, 0
      %s75 = sadd.s32 %s33, %s29
      %p76 = scmp.lt.s32.totalorder %s75, 0
      %s77 = scalar_select %p76, %s75, 0
      %s78 = ssub.s32 %s18, %s37
      %s79 = ssub.s32 %s74, %s77
      %s80 = sor.u32 %s78, %s79
      %p81 = scmp.eq.s32.totalorder %s80, 0
      %s83 = sadd.s32 %s82, 1
      %s84 = scalar_select %p81, %s82, %s83
      %p87 = pneg %p81
      %p88 = scmp.eq.s32.totalorder %s11, 1
      %p89 = por %p87, %p88
      %p90 = scmp.ne.s32.totalorder %s82, %s85
      %p91 = scmp.eq.s32.totalorder %s11, 0
      %p92 = por %p90, %p91
      %p93 = scmp.ne.s32.totalorder %s82, %s85
      %p94 = scmp.eq.s32.totalorder %s16, 1
      %p95 = por %p93, %p94
      %p96 = scmp.ne.s32.totalorder %s85, %s86
      %p97 = scmp.eq.s32.totalorder %s16, 0
      %p98 = por %p96, %p97
      %p99 = scmp.ne.s32.totalorder %s85, %s86
      %p100 = scmp.eq.s32.totalorder %s17, 1
      %p101 = por %p99, %p100
      %p103 = scmp.ne.s32.totalorder %s86, %s102
      %p104 = scmp.eq.s32.totalorder %s17, 0
      %p105 = por %p103, %p104
      %s106 = ssub.s32 %s18, %s37
      %s107 = ssub.s32 %s19, %s33
      %s108 = sor.u32 %s106, %s107
      %p109 = scmp.eq.s32.totalorder %s108, 0
      %s111 = sadd.s32 %s110, 1
      %s112 = scalar_select %p109, %s110, %s111
      %p115 = pneg %p109
      %p116 = scmp.eq.s32.totalorder %s11, 1
      %p117 = por %p115, %p116
      %p118 = scmp.ne.s32.totalorder %s110, %s113
      %p119 = scmp.eq.s32.totalorder %s11, 0
      %p120 = por %p118, %p119
      %p121 = scmp.ne.s32.totalorder %s110, %s113
      %p122 = scmp.eq.s32.totalorder %s16, 1
      %p123 = por %p121, %p122
      %p124 = scmp.ne.s32.totalorder %s113, %s114
      %p125 = scmp.eq.s32.totalorder %s16, 0
      %p126 = por %p124, %p125
      %p127 = scmp.ne.s32.totalorder %s113, %s114
      %p128 = scmp.eq.s32.totalorder %s17, 1
      %p129 = por %p127, %p128
      %p131 = scmp.ne.s32.totalorder %s114, %s130
      %p132 = scmp.eq.s32.totalorder %s17, 0
      %p133 = por %p131, %p132
      %p134 = scmp.le.s32.totalorder 1, %s11
      %p135 = scmp.lt.s32.totalorder %s11, 3
      %p136 = pnand %p134, %p135
      %p137 = pneg %p136
      // Predicated region
      $region9: #{tpu_custom_call.1} parent=5 // pred_check
        _
      $region10: #{tpu_custom_call.1} parent=5 // pred_check_branch
        %139 = sbr.rel (%p136) target = $region12
      $region11: #{tpu_custom_call.1} parent=5 // pred_region
        %s140 = ssub.s32 %s11, 1
      $region12: #{tpu_custom_call.1} parent=5 // pred_fallthru
        _
      %p141 = scmp.lt.s32.totalorder %s11, 2
      // Predicated region
      $region13: #{tpu_custom_call.1} parent=5 // pred_check
        %p142 = pneg %p141
      $region14: #{tpu_custom_call.1} parent=5 // pred_check_branch
        %144 = sbr.rel (%p142) target = $region16
      $region15: #{tpu_custom_call.1} parent=5 // pred_region
        // Predicated region
        $region17: #{tpu_custom_call.1} parent=15 // pred_check
          %p145 = pneg %p58
        $region18: #{tpu_custom_call.1} parent=15 // pred_check_branch
          %147 = sbr.rel (%p145) target = $region20
        $region19: #{tpu_custom_call.1} parent=15 // pred_region
          %s148 = sand.u32 %s48, 1
          %s149 = scalar_lea.sflag [#allocation3], %s148
          %s150 = sand.u32 %s48, 1
          %s151 = smul.addr %s150, 8
          %s152 = scalar_lea.vmem [#allocation2], %s151
          %s153 = sadd.s32 %s19, %s20
          %p154 = scmp.lt.s32.totalorder %s153, 0
          %s155 = scalar_select %p154, %s153, 0
          %s156 = smul.u32 2, %s155
          %s158 = ssub.s32 128, 128
          %159 = vsyncadd %s149, %s158
          %s160 = smul.addr %s18, 2
          %s161 = sadd.s32 %s156, %s160
          %s162 = smul.addr %s161, 64
          %s163 = scalar_lea.hbm %s0, %s162
          %s165 = sshll.u32 %s152, 4
          %s166 = int_to_ptr.vmem [resolvable:$true] %s165
          %168 = dma.hbm_to_vmem [thread:$0]  %s163, 128, %s166, %s149
        $region20: #{tpu_custom_call.1} parent=15 // pred_fallthru
          _
        // Predicated region
        $region21: #{tpu_custom_call.1} parent=15 // pred_check
          %p169 = pneg %p92
        $region22: #{tpu_custom_call.1} parent=15 // pred_check_branch
          %171 = sbr.rel (%p169) target = $region24
        $region23: #{tpu_custom_call.1} parent=15 // pred_region
          %s172 = sadd.s32 %s19, %s20
          %p173 = scmp.lt.s32.totalorder %s172, 0
          %s174 = scalar_select %p173, %s172, 0
          %s175 = smul.u32 2, %s174
          %p176 = scmp.lt.s32.totalorder %s18, 1
          %s177 = scalar_select %p176, %s18, 1
          %p178 = scmp.lt.s32.totalorder %s175, 1
          %s179 = scalar_select %p178, %s175, 1
          %s180 = smul.addr %s177, 2
          %s181 = sadd.s32 %s179, %s180
          %s182 = scalar_lea.vmem %s1, %s181
          %s183 = sadd.s32 %s19, %s20
          %p184 = scmp.lt.s32.totalorder %s183, 0
          %s185 = scalar_select %p184, %s183, 0
          %s186 = smul.u32 2, %s185
        $region24: #{tpu_custom_call.1} parent=15 // pred_fallthru
          _
      $region16: #{tpu_custom_call.1} parent=5 // pred_fallthru
        _
      %p187 = scmp.le.s32.totalorder 1, %s11
      %p188 = scmp.lt.s32.totalorder %s11, 3
      %p189 = pnand %p187, %p188
      %p190 = pneg %p189
      // Predicated region
      $region25: #{tpu_custom_call.1} parent=5 // pred_check
        _
      $region26: #{tpu_custom_call.1} parent=5 // pred_check_branch
        %192 = sbr.rel (%p189) target = $region28
      $region27: #{tpu_custom_call.1} parent=5 // pred_region
        %s193 = ssub.s32 %s11, 1
        %s194 = sand.u32 %s51, 1
        %s195 = scalar_lea.sflag [#allocation3], %s194
        %s196 = sand.u32 %s51, 1
        %s197 = smul.addr %s196, 8
        %s198 = scalar_lea.vmem [#allocation2], %s197
        // Predicated region
        $region29: #{tpu_custom_call.1} parent=27 // pred_check
          %p199 = pneg %p64
        $region30: #{tpu_custom_call.1} parent=27 // pred_check_branch
          %201 = sbr.rel (%p199) target = $region32
        $region31: #{tpu_custom_call.1} parent=27 // pred_region
          %202 = dma.done %s195, 128
        $region32: #{tpu_custom_call.1} parent=27 // pred_fallthru
          _
        %s203 = sand.u32 %s51, 1
        %s204 = scalar_lea.sflag [#allocation3], %s203
        %s205 = sand.u32 %s51, 1
        %s206 = smul.addr %s205, 8
        %s207 = scalar_lea.vmem [#allocation2], %s206
        %p208 = pneg %p64
        %p209 = pneg %p61
        %s210 = sadd.s32 %s22, %s23
        %p211 = scmp.lt.s32.totalorder %s210, 0
        %s212 = scalar_select %p211, %s210, 0
        %s213 = smul.u32 2, %s212
        %p214 = scmp.lt.s32.totalorder %s21, 1
        %s215 = scalar_select %p214, %s21, 1
        %p216 = scmp.lt.s32.totalorder %s213, 1
        %s217 = scalar_select %p216, %s213, 1
        %s218 = smul.addr %s215, 2
        %s219 = sadd.s32 %s217, %s218
        %s220 = scalar_lea.vmem %s1, %s219
        %p221 = pneg %p98
        %p222 = pneg %p95
        %p223 = pneg %p126
        %p224 = pneg %p123
        %p225 = scmp.lt.s32.totalorder %s21, 1
        %s226 = scalar_select %p225, %s21, 1
        %p227 = scmp.lt.s32.totalorder %s22, 0
        %s228 = scalar_select %p227, %s22, 0
        %s229 = sadd.s32 %s228, %s226
        %s230 = smul.addr %s229, 4
        %s231 = scalar_lea.vmem %s2, %s230
        %s232 = sadd.s32 %s22, %s23
        %p233 = scmp.lt.s32.totalorder %s232, 0
        %s234 = scalar_select %p233, %s232, 0
        %s235 = smul.u32 2, %s234
        %s236 = sadd.s32 %s22, %s23
        %p237 = scmp.lt.s32.totalorder %s236, 0
        %s238 = scalar_select %p237, %s236, 0
        %s239 = smul.u32 2, %s238
        %p240 = scmp.lt.s32.totalorder %s21, 1
        %s241 = scalar_select %p240, %s21, 1
        %p242 = scmp.lt.s32.totalorder %s239, 1
        %s243 = scalar_select %p242, %s239, 1
        %s244 = smul.addr %s241, 2
        %s245 = sadd.s32 %s243, %s244
        %s246 = scalar_lea.vmem %s1, %s245
        %s247 = sadd.s32 %s22, %s23
        %p248 = scmp.lt.s32.totalorder %s247, 0
        %s249 = scalar_select %p248, %s247, 0
        %s250 = smul.u32 2, %s249
        %p251 = scmp.lt.s32.totalorder %s21, 1
        %s252 = scalar_select %p251, %s21, 1
        %p253 = scmp.lt.s32.totalorder %s22, 0
        %s254 = scalar_select %p253, %s22, 0
        %s255 = sadd.s32 %s254, %s252
        %s256 = smul.addr %s255, 4
        %s257 = scalar_lea.vmem %s2, %s256
        %s258 = sadd.s32 %s22, %s23
        %s259 = smul.u32 %s258, 256
        %v260 = vld [vmem:[%s198] sm:$0xff]
        %v261 = vld [vmem:[%s246] sm:$0x3]
        %v262 = vunpack.c.0.s8 %v261
        %v263 = vlaneseq
        %v264 = vand.u32 %v263, 127
        %v265 = vadd.s32 %v264, 128
        %v266 = vstv %s259
        %v267 = vadd.s32 %v264, %v266
        %v268 = vadd.s32 %v265, %v266
        %vm269 = vcmp.lt.s32.totalorder %v267, 256
        %vm270 = vcmp.lt.s32.totalorder %v268, 256
        %v271 = vlaneseq
        %v272 = vshrl.u32 %v271, 7
        %v273 = vlaneseq
        %v274 = vshrl.u32 %v273, 7
        %v275 = vsub.s32 0, %v274
        %v276 = vrot.slane %v262, %v275
        %v277 = vlaneseq
        %v278 = vshrl.u32 %v277, 7
        %v279 = vsub.s32 4, %v278
        %v280 = vrot.slane %v262, %v279
        %v281 = vlaneseq
        %v282 = vshrl.u32 %v281, 7
        %v283 = vsub.s32 0, %v282
        %v284 = vrot.slane %v276, %v283
        %v285 = vlaneseq
        %v286 = vshrl.u32 %v285, 7
        %v287 = vsub.s32 0, %v286
        %v288 = vrot.slane %v280, %v287
        %vm289 = vcmp.eq.s32.totalorder %v272, %v284
        %vm290 = vcmp.eq.s32.totalorder %v272, %v288
        %v291 = vsel %vm269, 1, 0
        %v292 = vsel %vm270, 1, 0
        %vm293 = vcmp.eq.s32.totalorder %v291, 1
        %vm294 = vcmp.eq.s32.totalorder %v292, 1
        %vm295 = vmand %vm289, %vm293
        %vm296 = vmand %vm290, %vm294
        %v298 = vcombine.high %v260, %v260
        %vm300 = vcmask 1043456
        %v301 = vsel %vm300, %v260, -inf
        %v302 = vrot.slane %v301, 4
        %v303 = vmax.f32 %v301, %v302
        %v304 = vrot.slane %v303, 2
        %v305 = vmax.f32 %v303, %v304
        %v306 = vrot.slane %v305, 1
        %v307 = vmax.f32 %v305, %v306
        %v308 = vsel %vm300, %v298, -inf
        %v309 = vrot.slane %v308, 4
        %v310 = vmax.f32 %v308, %v309
        %v311 = vrot.slane %v310, 2
        %v312 = vmax.f32 %v310, %v311
        %v313 = vrot.slane %v312, 1
        %v314 = vmax.f32 %v312, %v313
        %v317 = vcombine.low %v307, %v314
        %v319 = vsub.f32 %v260, %v317
        %v320 = vmul.f32 %v319, 1.442695
        %v321 = vpow.pop %v320
        %v323 = vcombine.high %v321, %v321
        %v325 = vsel %vm300, %v321, 0.0
        %v326 = vrot.slane %v325, 4
        %v327 = vadd.f32 %v325, %v326
        %v328 = vrot.slane %v327, 2
        %v329 = vadd.f32 %v327, %v328
        %v330 = vrot.slane %v329, 1
        %v331 = vadd.f32 %v329, %v330
        %v332 = vsel %vm300, %v323, 0.0
        %v333 = vrot.slane %v332, 4
        %v334 = vadd.f32 %v332, %v333
        %v335 = vrot.slane %v334, 2
        %v336 = vadd.f32 %v334, %v335
        %v337 = vrot.slane %v336, 1
        %v338 = vadd.f32 %v336, %v337
        %v340 = vcombine.high %v319, %v319
        %v342 = vsel %vm295, %v319, 0.0
        %v343 = vsel %vm296, %v340, 0.0
        %v344 = vsel %vm300, %v342, 0.0
        %v345 = vrot.slane %v344, 4
        %v346 = vadd.f32 %v344, %v345
        %v347 = vrot.slane %v346, 2
        %v348 = vadd.f32 %v346, %v347
        %v349 = vrot.slane %v348, 1
        %v350 = vadd.f32 %v348, %v349
        %v351 = vsel %vm300, %v343, 0.0
        %v352 = vrot.slane %v351, 4
        %v353 = vadd.f32 %v351, %v352
        %v354 = vrot.slane %v353, 2
        %v355 = vadd.f32 %v353, %v354
        %v356 = vrot.slane %v355, 1
        %v357 = vadd.f32 %v355, %v356
        %v358 = vlog2.pop %v331
        %v359 = vmul.f32 %v358, 0.6931472
        %v360 = vlog2.pop %v338
        %v361 = vmul.f32 %v360, 0.6931472
        %v362 = vsub.f32 %v350, %v359
        %v363 = vsub.f32 %v357, %v361
        %v364 = vmul.f32 %v362, 1.442695
        %v365 = vpow.pop %v364
        %v366 = vmul.f32 %v363, 1.442695
        %v367 = vpow.pop %v366
        %v368 = vsub.f32 1.0, %v365
        %v369 = vsub.f32 1.0, %v367
        %v370 = vmul.f32 %v368, %v368
        %v371 = vmul.f32 %v369, %v369
        %v372 = vsub.f32 0.0, %v370
        %v373 = vsub.f32 0.0, %v371
        %v374 = vmul.f32 %v372, %v362
        %v375 = vmul.f32 %v373, %v363
        %v376 = vsel %vm295, %v374, 0.0
        %v377 = vsel %vm296, %v375, 0.0
        %v378 = vsel %vm300, %v376, 0.0
        %v379 = vsel %vm300, %v377, 0.0
        %v380 = vadd.f32 %v378, %v379
        %381 = vadd.xlane.f32.xlu0 %v380
        %v382 = vpop.xlane.xlu0 %381
        %p383 = scmp.eq.s32.totalorder %s23, 0
        // Predicated region
        $region33: #{tpu_custom_call.1} parent=27 // pred_check
          %p384 = pneg %p383
        $region34: #{tpu_custom_call.1} parent=27 // pred_check_branch
          %386 = sbr.rel (%p384) target = $region36
        $region35: #{tpu_custom_call.1} parent=27 // pred_region
          %vm387 = vcmask 3072
          %388 = vst.msk [vmem:[%s257] sm:$0xf] %vm387, %v382
        $region36: #{tpu_custom_call.1} parent=27 // pred_fallthru
          _
        %p389 = scmp.gt.s32.totalorder %s23, 0
        // Predicated region
        $region37: #{tpu_custom_call.1} parent=27 // pred_check
          %p390 = pneg %p389
        $region38: #{tpu_custom_call.1} parent=27 // pred_check_branch
          %392 = sbr.rel (%p390) target = $region40
        $region39: #{tpu_custom_call.1} parent=27 // pred_region
          %v393 = vld [vmem:[%s257] sm:$0xf]
          %v394 = vadd.f32 %v393, %v382
          %vm395 = vcmask 3072
          %396 = vst.msk [vmem:[%s257] sm:$0xf] %vm395, %v394
        $region40: #{tpu_custom_call.1} parent=27 // pred_fallthru
          _
        %p397 = scmp.lt.s32.totalorder %s21, 1
        %s398 = scalar_select %p397, %s21, 1
        %p399 = scmp.lt.s32.totalorder %s22, 0
        %s400 = scalar_select %p399, %s22, 0
        %s401 = sadd.s32 %s400, %s398
        %s402 = smul.addr %s401, 4
        %s403 = scalar_lea.vmem %s2, %s402
        // Predicated region
        $region41: #{tpu_custom_call.1} parent=27 // pred_check
          %p404 = pneg %p123
        $region42: #{tpu_custom_call.1} parent=27 // pred_check_branch
          %406 = sbr.rel (%p404) target = $region44
        $region43: #{tpu_custom_call.1} parent=27 // pred_region
          _
        $region44: #{tpu_custom_call.1} parent=27 // pred_fallthru
          _
      $region28: #{tpu_custom_call.1} parent=5 // pred_fallthru
        _
      %p407 = scmp.le.s32.totalorder 2, %s11
      // Predicated region
      $region45: #{tpu_custom_call.1} parent=5 // pred_check
        %p408 = pneg %p407
      $region46: #{tpu_custom_call.1} parent=5 // pred_check_branch
        %410 = sbr.rel (%p408) target = $region48
      $region47: #{tpu_custom_call.1} parent=5 // pred_region
        %s411 = ssub.s32 %s11, 2
        // Predicated region
        $region49: #{tpu_custom_call.1} parent=47 // pred_check
          %p412 = pneg %p129
        $region50: #{tpu_custom_call.1} parent=47 // pred_check_branch
          %414 = sbr.rel (%p412) target = $region52
        $region51: #{tpu_custom_call.1} parent=47 // pred_region
          %p415 = scmp.lt.s32.totalorder %s24, 1
          %s416 = scalar_select %p415, %s24, 1
          %p417 = scmp.lt.s32.totalorder %s25, 0
          %s418 = scalar_select %p417, %s25, 0
          %s419 = sadd.s32 %s418, %s416
          %s420 = smul.addr %s419, 4
          %s421 = scalar_lea.vmem %s2, %s420
        $region52: #{tpu_custom_call.1} parent=47 // pred_fallthru
          _
      $region48: #{tpu_custom_call.1} parent=5 // pred_fallthru
        _
    $region6: #{tpu_custom_call.1} parent=1 // loop_footer
      %s15 = sadd.s32 1, %s11
    $region7: #{tpu_custom_call.1} parent=1 // loop_footer_branch
      %10 = sbr.rel target = $region3
    $region8: #{tpu_custom_call.1} parent=1 // loop_exit
      _
    %422 = vsyncpa [#allocation3], 1
    %s423 = scalar_lea.sflag [#allocation3], 1
    %424 = vsyncpa %s423, 1

</llo_original>
